<compile_context>
chip_gen: v5e
topology: v5e:2x2
jax: 0.10.0
libtpu: 0.0.40
codegen_flags: <defaults>
</compile_context>

<pallas_src>
import functools

import jax
import jax.numpy as jnp
from jax.experimental import pallas as pl
from jax.experimental.pallas import tpu as pltpu


def _fused_dsconv_kernel(x_ref, w_ref, b_ref, o_ref, *, kh, kw, wpad, l_out):
    """One batch element per grid step.

    x_ref : (1, C_in, S)         padded input, spatial flattened onto lanes
                                 (S = Hp*Wp + kW - 1; the tail is slack so every
                                 tap slice below has static length l_out)
    w_ref : (C_out, kH*kW*C_in)  fused (pointwise @ depthwise) weights, row
                                 order k = (i*kW + j)*C_in + ci
    b_ref : (C_out, 1)           fused bias (f32)
    o_ref : (1, C_out, l_out)    l_out = H_out*Wp; columns w >= W_out of each
                                 flattened row are junk, sliced off by wrapper
    """
    x = x_ref[0]                                             # (C_in, S)

    # im2col: stack the kH*kW statically lane-shifted views along sublanes.
    chunks = [x[:, i * wpad + j: i * wpad + j + l_out]
              for i in range(kh) for j in range(kw)]
    patches = jnp.concatenate(chunks, axis=0)                # (kH*kW*C_in, l_out)

    # Single MXU matmul, K = C_in*kH*kW, f32 accumulation, lane-dense output.
    acc = jnp.dot(w_ref[...], patches,
                  preferred_element_type=jnp.float32)        # (C_out, l_out)
    acc = acc + b_ref[...]                                   # broadcast over lanes
    o_ref[0] = acc.astype(o_ref.dtype)


def depthwise_separable_conv(x_nchw, wd_torch, bd, wp_torch, bp, *, padding=0):
    """Forward pass matching the PyTorch module.

    x_nchw   : (N, C_in, H, W)
    wd_torch : (C_in * kpl, 1, kH, kW)   depthwise weight (PyTorch layout)
    bd       : (C_in * kpl,)
    wp_torch : (C_out, C_in * kpl, 1, 1) pointwise weight (PyTorch layout)
    bp       : (C_out,)
    returns  : (N, C_out, H_out, W_out)
    """
    n, c_in, h, w = x_nchw.shape
    c_mid, _, kh, kw = wd_torch.shape
    kpl = c_mid // c_in
    c_out = wp_torch.shape[0]
    p = padding
    hp, wpad = h + 2 * p, w + 2 * p
    h_out = hp - kh + 1
    w_out = wpad - kw + 1
    l_out = h_out * wpad                                     # lanes per output block

    # ---- glue: fold depthwise into pointwise (both stages are linear) ----
    wd_r = wd_torch[:, 0, :, :].reshape(c_in, kpl, kh, kw).astype(jnp.float32)
    wp2 = wp_torch[:, :, 0, 0].astype(jnp.float32)           # (C_out, C_mid)
    w_eff = jnp.einsum('ocm,cmij->ocij',
                       wp2.reshape(c_out, c_in, kpl), wd_r)  # (C_out,C_in,kH,kW)
    # Row order of the in-kernel im2col stack: k = (i*kW + j)*C_in + ci.
    w_mat = w_eff.transpose(0, 2, 3, 1).reshape(c_out, kh * kw * c_in)
    w_mat = w_mat.astype(x_nchw.dtype)
    b_eff = (bp.astype(jnp.float32)
             + wp2 @ bd.astype(jnp.float32)).reshape(c_out, 1)

    # ---- glue: zero pad + flatten spatial onto the lane axis ----
    xpad = jnp.pad(x_nchw, ((0, 0), (0, 0), (p, p), (p, p)))
    x_flat = xpad.reshape(n, c_in, hp * wpad)
    x_flat = jnp.pad(x_flat, ((0, 0), (0, 0), (0, kw - 1)))  # slack for last taps
    s_len = hp * wpad + kw - 1

    kernel = functools.partial(_fused_dsconv_kernel,
                               kh=kh, kw=kw, wpad=wpad, l_out=l_out)

    out_flat = pl.pallas_call(
        kernel,
        out_shape=jax.ShapeDtypeStruct((n, c_out, l_out), x_nchw.dtype),
        grid_spec=pltpu.PrefetchScalarGridSpec(
            num_scalar_prefetch=0,
            grid=(n,),
            in_specs=[
                pl.BlockSpec((1, c_in, s_len), lambda b: (b, 0, 0)),
                pl.BlockSpec((c_out, kh * kw * c_in), lambda b: (0, 0)),
                pl.BlockSpec((c_out, 1), lambda b: (0, 0)),
            ],
            out_specs=pl.BlockSpec((1, c_out, l_out), lambda b: (b, 0, 0)),
        ),
        compiler_params=pltpu.CompilerParams(
            dimension_semantics=("parallel",)),
    )(x_flat, w_mat, b_eff)

    # Already NCHW order: just un-flatten and drop the junk columns w >= W_out.
    out = out_flat.reshape(n, c_out, h_out, wpad)[:, :, :, :w_out]
    return out


def _reference(x_nchw, wd_torch, bd, wp_torch, bp, *, padding=0):
    """Pure-JAX reference using lax convs (PyTorch NCHW semantics)."""
    c_in = x_nchw.shape[1]
    y = jax.lax.conv_general_dilated(
        x_nchw.astype(jnp.float32), wd_torch.astype(jnp.float32),
        window_strides=(1, 1), padding=[(padding, padding)] * 2,
        feature_group_count=c_in,
        dimension_numbers=("NCHW", "OIHW", "NCHW"))
    y = y + bd.astype(jnp.float32)[None, :, None, None]
    z = jax.lax.conv_general_dilated(
        y, wp_torch.astype(jnp.float32),
        window_strides=(1, 1), padding="VALID",
        dimension_numbers=("NCHW", "OIHW", "NCHW"))
    return (z + bp.astype(jnp.float32)[None, :, None, None]).astype(x_nchw.dtype)


if __name__ == "__main__":
    # Module config: in_channels=4, output_channels=8, kernel_size=3,
    #                padding=1, kernels_per_layer=1
    in_channels, out_channels, ksize, padding, kpl = 4, 8, 3, 1, 1
    c_mid = in_channels * kpl

    key = jax.random.PRNGKey(0)
    kx, k1, k2, k3, k4 = jax.random.split(key, 5)

    x = jax.random.normal(kx, (2, in_channels, 16, 16), jnp.float32)
    wd = jax.random.normal(k1, (c_mid, 1, ksize, ksize), jnp.float32) * 0.1
    bd = jax.random.normal(k2, (c_mid,), jnp.float32) * 0.1
    wp = jax.random.normal(k3, (out_channels, c_mid, 1, 1), jnp.float32) * 0.1
    bp = jax.random.normal(k4, (out_channels,), jnp.float32) * 0.1

    out = depthwise_separable_conv(x, wd, bd, wp, bp, padding=padding)
    out = jax.block_until_ready(out)

    ref = _reference(x, wd, bd, wp, bp, padding=padding)
    assert out.shape == (2, out_channels, 16, 16), out.shape
    assert jnp.allclose(out, ref, atol=1e-4, rtol=1e-4), \
        float(jnp.max(jnp.abs(out - ref)))

    print("KERNEL_OK")
</pallas_src>

<mosaic_0001>
module attributes {stable_mosaic.version = 11 : i64} {
  func.func @_fused_dsconv_kernel(%arg0: i32, %arg1: memref<1x4x326xf32, #tpu.memory_space<vmem>>, %arg2: memref<8x36xf32, #tpu.memory_space<vmem>>, %arg3: memref<8x1xf32, #tpu.memory_space<vmem>>, %arg4: memref<1x8x288xf32, #tpu.memory_space<vmem>>) attributes {dimension_semantics = [#tpu.dimension_semantics<parallel>], iteration_bounds = array<i64: 2>, scalar_prefetch = 0 : i64, scratch_operands = 0 : i64, tpu.core_type = #tpu.core_type<tc>, window_params = [{transform_indices = @transform_0, window_bounds = array<i64: 1, 4, 326>}, {pipeline_mode = #tpu.pipeline_mode<synchronous>, transform_indices = @transform_1, window_bounds = array<i64: 8, 36>}, {pipeline_mode = #tpu.pipeline_mode<synchronous>, transform_indices = @transform_2, window_bounds = array<i64: 8, 1>}, {transform_indices = @transform_3, window_bounds = array<i64: 1, 8, 288>}]} {
    %c0 = arith.constant 0 : index
    %c0_0 = arith.constant 0 : index
    %c0_1 = arith.constant 0 : index
    %0 = vector.load %arg1[%c0, %c0_0, %c0_1] : memref<1x4x326xf32, #tpu.memory_space<vmem>>, vector<1x4x326xf32>
    %1 = vector.shape_cast %0 : vector<1x4x326xf32> to vector<4x326xf32>
    %2 = vector.extract_strided_slice %1 {offsets = [0, 0], sizes = [4, 288], strides = [1, 1]} : vector<4x326xf32> to vector<4x288xf32>
    %3 = vector.extract_strided_slice %1 {offsets = [0, 1], sizes = [4, 288], strides = [1, 1]} : vector<4x326xf32> to vector<4x288xf32>
    %4 = vector.extract_strided_slice %1 {offsets = [0, 2], sizes = [4, 288], strides = [1, 1]} : vector<4x326xf32> to vector<4x288xf32>
    %5 = vector.extract_strided_slice %1 {offsets = [0, 18], sizes = [4, 288], strides = [1, 1]} : vector<4x326xf32> to vector<4x288xf32>
    %6 = vector.extract_strided_slice %1 {offsets = [0, 19], sizes = [4, 288], strides = [1, 1]} : vector<4x326xf32> to vector<4x288xf32>
    %7 = vector.extract_strided_slice %1 {offsets = [0, 20], sizes = [4, 288], strides = [1, 1]} : vector<4x326xf32> to vector<4x288xf32>
    %8 = vector.extract_strided_slice %1 {offsets = [0, 36], sizes = [4, 288], strides = [1, 1]} : vector<4x326xf32> to vector<4x288xf32>
    %9 = vector.extract_strided_slice %1 {offsets = [0, 37], sizes = [4, 288], strides = [1, 1]} : vector<4x326xf32> to vector<4x288xf32>
    %10 = vector.extract_strided_slice %1 {offsets = [0, 38], sizes = [4, 288], strides = [1, 1]} : vector<4x326xf32> to vector<4x288xf32>
    %11 = tpu.concatenate %2, %3, %4, %5, %6, %7, %8, %9, %10 in 0 : vector<4x288xf32>, vector<4x288xf32>, vector<4x288xf32>, vector<4x288xf32>, vector<4x288xf32>, vector<4x288xf32>, vector<4x288xf32>, vector<4x288xf32>, vector<4x288xf32> -> vector<36x288xf32>
    %c0_2 = arith.constant 0 : index
    %c0_3 = arith.constant 0 : index
    %12 = vector.load %arg2[%c0_2, %c0_3] : memref<8x36xf32, #tpu.memory_space<vmem>>, vector<8x36xf32>
    %cst = arith.constant dense<0.000000e+00> : vector<8x288xf32>
    %13 = tpu.matmul %12, %11, %cst {dimension_numbers = #tpu.dot_dimension_numbers<[1], [0], [0], [1], [0, 0, 1, 1], [], []>} : vector<8x36xf32>, vector<36x288xf32>, vector<8x288xf32> -> vector<8x288xf32>
    %c0_4 = arith.constant 0 : index
    %c0_5 = arith.constant 0 : index
    %14 = vector.load %arg3[%c0_4, %c0_5] : memref<8x1xf32, #tpu.memory_space<vmem>>, vector<8x1xf32>
    %15 = vector.broadcast %14 : vector<8x1xf32> to vector<8x288xf32>
    %16 = arith.addf %13, %15 : vector<8x288xf32>
    %c0_6 = arith.constant 0 : index
    %c0_7 = arith.constant 0 : index
    %c0_8 = arith.constant 0 : index
    %17 = vector.load %arg4[%c0_6, %c0_7, %c0_8] : memref<1x8x288xf32, #tpu.memory_space<vmem>>, vector<1x8x288xf32>
    %18 = vector.shape_cast %17 : vector<1x8x288xf32> to vector<8x288xf32>
    %19 = vector.shape_cast %16 : vector<8x288xf32> to vector<1x8x288xf32>
    tpu.vector_store %arg4[%c0_6, %c0_7, %c0_8], %19 {strides = array<i32>} : memref<1x8x288xf32, #tpu.memory_space<vmem>>, vector<1x8x288xf32>,
    return
  }
  func.func @transform_0(%arg0: i32) -> (i32, i32, i32) {
    %c0_i32 = arith.constant 0 : i32
    %c0_i32_0 = arith.constant 0 : i32
    %c0_i32_1 = arith.constant 0 : i32
    return %arg0, %c0_i32, %c0_i32_0 : i32, i32, i32
  }
  func.func @transform_1(%arg0: i32) -> (i32, i32) {
    %c0_i32 = arith.constant 0 : i32
    %c0_i32_0 = arith.constant 0 : i32
    %c0_i32_1 = arith.constant 0 : i32
    return %c0_i32, %c0_i32_0 : i32, i32
  }
  func.func @transform_2(%arg0: i32) -> (i32, i32) {
    %c0_i32 = arith.constant 0 : i32
    %c0_i32_0 = arith.constant 0 : i32
    %c0_i32_1 = arith.constant 0 : i32
    return %c0_i32, %c0_i32_0 : i32, i32
  }
  func.func @transform_3(%arg0: i32) -> (i32, i32, i32) {
    %c0_i32 = arith.constant 0 : i32
    %c0_i32_0 = arith.constant 0 : i32
    %c0_i32_1 = arith.constant 0 : i32
    return %arg0, %c0_i32, %c0_i32_0 : i32, i32, i32
  }
}

</mosaic_0001>

<llo_original>
// kernel: tpu_custom_call.1
$region0: #{tpu_custom_call.1}
  #allocation0 [shape = 'u32[]', space=smem, size = 0x4, offset = 0x4, fixed_abs, tag = 'smem constant byte address 0x4 - core index']
  #allocation1 [shape = 'u32[72,128]{1,0:T(1,128)}', space=vmem, size = 0x9000, scoped, tag = 'internal scratch']
  %s0 = inlined_call_operand.hbm [shape: f32[2,4,326], index: 0, kind: input, shape index: {}]
  %s1 = inlined_call_operand.vmem [shape: f32[8,36], index: 1, kind: input, shape index: {}]
  %s2 = inlined_call_operand.vmem [shape: f32[8,1], index: 2, kind: input, shape index: {}]
  %s3 = inlined_call_operand.hbm [shape: f32[2,8,288], index: 3, kind: output, shape index: {}]
  %s4 = sld [smem:[#allocation0]]
  $region49: #{tpu_custom_call.1} parent=0
    _
  %s6 = ssub.s32 1, %s4
  %s7 = scalar_select 0, %s6, %s4
  $region1: #{tpu_custom_call.1} parent=0
    #allocation2 [shape = 'u8[12288]{0}', space=vmem, size = 0x3000, scoped, tag = 'input window, operand 0']
    #allocation3 [shape = 's32[2]{0}', space=sflag, size = 0x8, scoped, tag = 'scoped memory for tpu_custom_call.1']
    #allocation4 [shape = 's32[2]{0}', space=sflag, size = 0x8, scoped, tag = 'scoped memory for tpu_custom_call.1']
    #allocation5 [shape = 'u8[24576]{0}', space=vmem, size = 0x6000, scoped, tag = 'output window, operand 0']
    %8 = vsyncpa [#allocation3], 0
    %s9 = scalar_lea.sflag [#allocation3], 1
    %10 = vsyncpa %s9, 0
    %11 = vsyncpa [#allocation4], 0
    %s12 = scalar_lea.sflag [#allocation4], 1
    %13 = vsyncpa %s12, 0
    loop: start=0, step=1, limit=4
    $region2: #{tpu_custom_call.1} parent=1 // loop_pre_header
      _
    $region3: #{tpu_custom_call.1} parent=1 // loop_header
      %s15 = sphi 0, %s19
      %p16 = scmp.ge.s32.totalorder %s15, 4
      %s25 = sphi 0, %s27
      %s28 = sphi 0, %s25
      %s29 = sphi 0, %s28
      %s45 = sphi 0, %s29
      %s49 = sphi 0, %s49
      %s51 = sphi 0, %s49
      %s52 = sphi 0, %s51
      %s66 = sphi 0, %s52
      %s70 = sphi 0, %s70
      %s72 = sphi 0, %s70
      %s73 = sphi 0, %s72
      %s87 = sphi 0, %s73
      %s93 = sphi 0, %s95
      %s96 = sphi 0, %s93
      %s97 = sphi 0, %s96
      %s113 = sphi 0, %s97
    $region4: #{tpu_custom_call.1} parent=1 // loop_header_branch
      %18 = sbr.rel (%p16) target = $region8
    $region5: #{tpu_custom_call.1} parent=1 // loop_body
      %s20 = ssub.s32 %s15, 1
      %s21 = ssub.s32 %s15, 2
      %s22 = sadd.s32 %s15, 1
      %s23 = ssub.s32 %s15, %s22
      %p24 = scmp.eq.s32.totalorder %s23, 0
      %s26 = sadd.s32 %s25, 1
      %s27 = scalar_select %p24, %s25, %s26
      %p30 = pneg %p24
      %p31 = scmp.eq.s32.totalorder %s15, 1
      %p32 = por %p30, %p31
      %p33 = scmp.ne.s32.totalorder %s25, %s28
      %p34 = scmp.eq.s32.totalorder %s15, 0
      %p35 = por %p33, %p34
      %p36 = scmp.ne.s32.totalorder %s25, %s28
      %p37 = scmp.eq.s32.totalorder %s20, 1
      %p38 = por %p36, %p37
      %p39 = scmp.ne.s32.totalorder %s28, %s29
      %p40 = scmp.eq.s32.totalorder %s20, 0
      %p41 = por %p39, %p40
      %p42 = scmp.ne.s32.totalorder %s28, %s29
      %p43 = scmp.eq.s32.totalorder %s21, 1
      %p44 = por %p42, %p43
      %p46 = scmp.ne.s32.totalorder %s29, %s45
      %p47 = scmp.eq.s32.totalorder %s21, 0
      %p48 = por %p46, %p47
      %s50 = sadd.s32 %s49, 1
      %p53 = scmp.eq.s32.totalorder %s15, 1
      %p54 = scmp.ne.s32.totalorder %s49, %s51
      %p55 = scmp.eq.s32.totalorder %s15, 0
      %p56 = por %p54, %p55
      %p57 = scmp.ne.s32.totalorder %s49, %s51
      %p58 = scmp.eq.s32.totalorder %s20, 1
      %p59 = por %p57, %p58
      %p60 = scmp.ne.s32.totalorder %s51, %s52
      %p61 = scmp.eq.s32.totalorder %s20, 0
      %p62 = por %p60, %p61
      %p63 = scmp.ne.s32.totalorder %s51, %s52
      %p64 = scmp.eq.s32.totalorder %s21, 1
      %p65 = por %p63, %p64
      %p67 = scmp.ne.s32.totalorder %s52, %s66
      %p68 = scmp.eq.s32.totalorder %s21, 0
      %p69 = por %p67, %p68
      %s71 = sadd.s32 %s70, 1
      %p74 = scmp.eq.s32.totalorder %s15, 1
      %p75 = scmp.ne.s32.totalorder %s70, %s72
      %p76 = scmp.eq.s32.totalorder %s15, 0
      %p77 = por %p75, %p76
      %p78 = scmp.ne.s32.totalorder %s70, %s72
      %p79 = scmp.eq.s32.totalorder %s20, 1
      %p80 = por %p78, %p79
      %p81 = scmp.ne.s32.totalorder %s72, %s73
      %p82 = scmp.eq.s32.totalorder %s20, 0
      %p83 = por %p81, %p82
      %p84 = scmp.ne.s32.totalorder %s72, %s73
      %p85 = scmp.eq.s32.totalorder %s21, 1
      %p86 = por %p84, %p85
      %p88 = scmp.ne.s32.totalorder %s73, %s87
      %p89 = scmp.eq.s32.totalorder %s21, 0
      %p90 = por %p88, %p89
      %s91 = ssub.s32 %s15, %s22
      %p92 = scmp.eq.s32.totalorder %s91, 0
      %s94 = sadd.s32 %s93, 1
      %s95 = scalar_select %p92, %s93, %s94
      %p98 = pneg %p92
      %p99 = scmp.eq.s32.totalorder %s15, 1
      %p100 = por %p98, %p99
      %p101 = scmp.ne.s32.totalorder %s93, %s96
      %p102 = scmp.eq.s32.totalorder %s15, 0
      %p103 = por %p101, %p102
      %p104 = scmp.ne.s32.totalorder %s93, %s96
      %p105 = scmp.eq.s32.totalorder %s20, 1
      %p106 = por %p104, %p105
      %p107 = scmp.ne.s32.totalorder %s96, %s97
      %p108 = scmp.eq.s32.totalorder %s20, 0
      %p109 = por %p107, %p108
      %p110 = scmp.ne.s32.totalorder %s96, %s97
      %p111 = scmp.eq.s32.totalorder %s21, 1
      %p112 = por %p110, %p111
      %p114 = scmp.ne.s32.totalorder %s97, %s113
      %p115 = scmp.eq.s32.totalorder %s21, 0
      %p116 = por %p114, %p115
      %p117 = scmp.le.s32.totalorder 1, %s15
      %p118 = scmp.lt.s32.totalorder %s15, 3
      %p119 = pnand %p117, %p118
      %p120 = pneg %p119
      // Predicated region
      $region9: #{tpu_custom_call.1} parent=5 // pred_check
        _
      $region10: #{tpu_custom_call.1} parent=5 // pred_check_branch
        %122 = sbr.rel (%p119) target = $region12
      $region11: #{tpu_custom_call.1} parent=5 // pred_region
        %s123 = ssub.s32 %s15, 1
        // Predicated region
        $region13: #{tpu_custom_call.1} parent=11 // pred_check
          %p124 = pneg %p62
        $region14: #{tpu_custom_call.1} parent=11 // pred_check_branch
          %126 = sbr.rel (%p124) target = $region16
        $region15: #{tpu_custom_call.1} parent=11 // pred_region
          _
        $region16: #{tpu_custom_call.1} parent=11 // pred_fallthru
          _
        // Predicated region
        $region17: #{tpu_custom_call.1} parent=11 // pred_check
          %p127 = pneg %p83
        $region18: #{tpu_custom_call.1} parent=11 // pred_check_branch
          %129 = sbr.rel (%p127) target = $region20
        $region19: #{tpu_custom_call.1} parent=11 // pred_region
          _
        $region20: #{tpu_custom_call.1} parent=11 // pred_fallthru
          _
      $region12: #{tpu_custom_call.1} parent=5 // pred_fallthru
        _
      %p130 = scmp.lt.s32.totalorder %s15, 2
      // Predicated region
      $region21: #{tpu_custom_call.1} parent=5 // pred_check
        %p131 = pneg %p130
      $region22: #{tpu_custom_call.1} parent=5 // pred_check_branch
        %133 = sbr.rel (%p131) target = $region24
      $region23: #{tpu_custom_call.1} parent=5 // pred_region
        // Predicated region
        $region25: #{tpu_custom_call.1} parent=23 // pred_check
          %p134 = pneg %p35
        $region26: #{tpu_custom_call.1} parent=23 // pred_check_branch
          %136 = sbr.rel (%p134) target = $region28
        $region27: #{tpu_custom_call.1} parent=23 // pred_region
          %s137 = sand.u32 %s25, 1
          %s138 = scalar_lea.sflag [#allocation3], %s137
          %s139 = sand.u32 %s25, 1
          %s140 = smul.addr %s139, 12
          %s141 = scalar_lea.vmem [#allocation2], %s140
          %143 = vsyncadd %s138, 0
          %s144 = smul.addr %s15, 3
          %s145 = smul.addr %s144, 4
          %s146 = scalar_lea.hbm %s0, %s145
          %s148 = sshll.u32 %s146, 4
          %s149 = int_to_ptr.hbm [resolvable:$true] %s148
          %s150 = sshll.u32 %s141, 4
          %s151 = int_to_ptr.vmem [resolvable:$true] %s150
          %153 = dma.hbm_to_vmem [thread:$0]  %s149, 192, %s151, %s138
        $region28: #{tpu_custom_call.1} parent=23 // pred_fallthru
          _
      $region24: #{tpu_custom_call.1} parent=5 // pred_fallthru
        _
      %p154 = scmp.le.s32.totalorder 1, %s15
      %p155 = scmp.lt.s32.totalorder %s15, 3
      %p156 = pnand %p154, %p155
      %p157 = pneg %p156
      // Predicated region
      $region29: #{tpu_custom_call.1} parent=5 // pred_check
        _
      $region30: #{tpu_custom_call.1} parent=5 // pred_check_branch
        %159 = sbr.rel (%p156) target = $region32
      $region31: #{tpu_custom_call.1} parent=5 // pred_region
        %s160 = ssub.s32 %s15, 1
        %s161 = sand.u32 %s28, 1
        %s162 = scalar_lea.sflag [#allocation3], %s161
        %s163 = sand.u32 %s28, 1
        %s164 = smul.addr %s163, 12
        %s165 = scalar_lea.vmem [#allocation2], %s164
        // Predicated region
        $region33: #{tpu_custom_call.1} parent=31 // pred_check
          %p166 = pneg %p41
        $region34: #{tpu_custom_call.1} parent=31 // pred_check_branch
          %168 = sbr.rel (%p166) target = $region36
        $region35: #{tpu_custom_call.1} parent=31 // pred_region
          %170 = dma.done %s162, 192
        $region36: #{tpu_custom_call.1} parent=31 // pred_fallthru
          _
        %s171 = sand.u32 %s28, 1
        %s172 = scalar_lea.sflag [#allocation3], %s171
        %s173 = sand.u32 %s28, 1
        %s174 = smul.addr %s173, 12
        %s175 = scalar_lea.vmem [#allocation2], %s174
        %p176 = pneg %p41
        %p177 = pneg %p38
        %p178 = pneg %p62
        %p179 = pneg %p59
        %p180 = pneg %p83
        %p181 = pneg %p80
        %p182 = pneg %p109
        %p183 = pneg %p106
        %s184 = sand.u32 %s96, 1
        %s185 = scalar_lea.sflag [#allocation4], %s184
        %s186 = sand.u32 %s96, 1
        %s187 = smul.addr %s186, 24
        %s188 = scalar_lea.vmem [#allocation5], %s187
        %v189 = vld [vmem:[%s165] sm:$0xff]
        %v190 = vld [vmem:[%s165 + $0x8] sm:$0xf]
        %193 = vst [vmem:[#allocation1] ss:$2 sm:$0xff] %v189
        %s194 = scalar_lea.vmem [#allocation1], 16
        %195 = vst [vmem:[%s194] ss:$2 sm:$0xff] %v190
        %v196 = vld.sshfl [vmem:[#allocation1] sm:$0xff pattern:$0x75316420]
        %v197 = vld.sshfl [vmem:[#allocation1 + $0x8] sm:$0xff pattern:$0x75316420]
        %v198 = vld.sshfl [vmem:[#allocation1 + $0x10] sm:$0xff pattern:$0x75316420]
        %s202 = scalar_lea.vmem [#allocation1], 1
        %203 = vst [vmem:[%s202] ss:$2 sm:$0xff] %v189
        %s204 = scalar_lea.vmem [#allocation1], 17
        %205 = vst [vmem:[%s204] ss:$2 sm:$0xff] %v190
        %v206 = vld.sshfl [vmem:[#allocation1] sm:$0xff pattern:$0x75316420]
        %v207 = vld.sshfl [vmem:[#allocation1 + $0x8] sm:$0xff pattern:$0x75316420]
        %v208 = vld.sshfl [vmem:[#allocation1 + $0x10] sm:$0xff pattern:$0x75316420]
        %209 = vrot.lane.b32.xlu0 %v206, 127
        %v210 = vpop.permute.xlu0 %209
        %211 = vrot.lane.b32.xlu0 %v207, 127
        %v212 = vpop.permute.xlu0 %211
        %213 = vrot.lane.b32.xlu0 %v208, 127
        %v214 = vpop.permute.xlu0 %213
        %vm215 = vcmask 1039360
        %v216 = vsel %vm215, %v210, %v212
        %v217 = vsel %vm215, %v212, %v214
        %221 = vst [vmem:[#allocation1] ss:$2 sm:$0xff] %v189
        %s222 = scalar_lea.vmem [#allocation1], 16
        %223 = vst [vmem:[%s222] ss:$2 sm:$0xff] %v190
        %v224 = vld.sshfl [vmem:[#allocation1] sm:$0xff pattern:$0x75316420]
        %v225 = vld.sshfl [vmem:[#allocation1 + $0x8] sm:$0xff pattern:$0x75316420]
        %v226 = vld.sshfl [vmem:[#allocation1 + $0x10] sm:$0xff pattern:$0x75316420]
        %227 = vrot.lane.b32.xlu0 %v224, 126
        %v228 = vpop.permute.xlu0 %227
        %229 = vrot.lane.b32.xlu0 %v225, 126
        %v230 = vpop.permute.xlu0 %229
        %231 = vrot.lane.b32.xlu0 %v226, 126
        %v232 = vpop.permute.xlu0 %231
        %vm233 = vcmask 1031168
        %v234 = vsel %vm233, %v228, %v230
        %v235 = vsel %vm233, %v230, %v232
        %s239 = scalar_lea.vmem [#allocation1], 1
        %240 = vst [vmem:[%s239] ss:$2 sm:$0xff] %v189
        %s241 = scalar_lea.vmem [#allocation1], 17
        %242 = vst [vmem:[%s241] ss:$2 sm:$0xff] %v190
        %v243 = vld.sshfl [vmem:[#allocation1] sm:$0xff pattern:$0x75316420]
        %v244 = vld.sshfl [vmem:[#allocation1 + $0x8] sm:$0xff pattern:$0x75316420]
        %v245 = vld.sshfl [vmem:[#allocation1 + $0x10] sm:$0xff pattern:$0x75316420]
        %246 = vrot.lane.b32.xlu0 %v243, 110
        %v247 = vpop.permute.xlu0 %246
        %248 = vrot.lane.b32.xlu0 %v244, 110
        %v249 = vpop.permute.xlu0 %248
        %250 = vrot.lane.b32.xlu0 %v245, 110
        %v251 = vpop.permute.xlu0 %250
        %vm252 = vcmask 900096
        %v253 = vsel %vm252, %v247, %v249
        %v254 = vsel %vm252, %v249, %v251
        %258 = vst [vmem:[#allocation1] ss:$2 sm:$0xff] %v189
        %s259 = scalar_lea.vmem [#allocation1], 16
        %260 = vst [vmem:[%s259] ss:$2 sm:$0xff] %v190
        %v261 = vld.sshfl [vmem:[#allocation1] sm:$0xff pattern:$0x75316420]
        %v262 = vld.sshfl [vmem:[#allocation1 + $0x8] sm:$0xff pattern:$0x75316420]
        %v263 = vld.sshfl [vmem:[#allocation1 + $0x10] sm:$0xff pattern:$0x75316420]
        %264 = vrot.lane.b32.xlu0 %v261, 109
        %v265 = vpop.permute.xlu0 %264
        %266 = vrot.lane.b32.xlu0 %v262, 109
        %v267 = vpop.permute.xlu0 %266
        %268 = vrot.lane.b32.xlu0 %v263, 109
        %v269 = vpop.permute.xlu0 %268
        %vm270 = vcmask 891904
        %v271 = vsel %vm270, %v265, %v267
        %v272 = vsel %vm270, %v267, %v269
        %s276 = scalar_lea.vmem [#allocation1], 1
        %277 = vst [vmem:[%s276] ss:$2 sm:$0xff] %v189
        %s278 = scalar_lea.vmem [#allocation1], 17
        %279 = vst [vmem:[%s278] ss:$2 sm:$0xff] %v190
        %v280 = vld.sshfl [vmem:[#allocation1] sm:$0xff pattern:$0x75316420]
        %v281 = vld.sshfl [vmem:[#allocation1 + $0x8] sm:$0xff pattern:$0x75316420]
        %v282 = vld.sshfl [vmem:[#allocation1 + $0x10] sm:$0xff pattern:$0x75316420]
        %283 = vrot.lane.b32.xlu0 %v280, 108
        %v284 = vpop.permute.xlu0 %283
        %285 = vrot.lane.b32.xlu0 %v281, 108
        %v286 = vpop.permute.xlu0 %285
        %287 = vrot.lane.b32.xlu0 %v282, 108
        %v288 = vpop.permute.xlu0 %287
        %vm289 = vcmask 883712
        %v290 = vsel %vm289, %v284, %v286
        %v291 = vsel %vm289, %v286, %v288
        %295 = vst [vmem:[#allocation1] ss:$2 sm:$0xff] %v189
        %s296 = scalar_lea.vmem [#allocation1], 16
        %297 = vst [vmem:[%s296] ss:$2 sm:$0xff] %v190
        %v298 = vld.sshfl [vmem:[#allocation1] sm:$0xff pattern:$0x75316420]
        %v299 = vld.sshfl [vmem:[#allocation1 + $0x8] sm:$0xff pattern:$0x75316420]
        %v300 = vld.sshfl [vmem:[#allocation1 + $0x10] sm:$0xff pattern:$0x75316420]
        %301 = vrot.lane.b32.xlu0 %v298, 92
        %v302 = vpop.permute.xlu0 %301
        %303 = vrot.lane.b32.xlu0 %v299, 92
        %v304 = vpop.permute.xlu0 %303
        %305 = vrot.lane.b32.xlu0 %v300, 92
        %v306 = vpop.permute.xlu0 %305
        %vm307 = vcmask 752640
        %v308 = vsel %vm307, %v302, %v304
        %v309 = vsel %vm307, %v304, %v306
        %s313 = scalar_lea.vmem [#allocation1], 1
        %314 = vst [vmem:[%s313] ss:$2 sm:$0xff] %v189
        %s315 = scalar_lea.vmem [#allocation1], 17
        %316 = vst [vmem:[%s315] ss:$2 sm:$0xff] %v190
        %v317 = vld.sshfl [vmem:[#allocation1] sm:$0xff pattern:$0x75316420]
        %v318 = vld.sshfl [vmem:[#allocation1 + $0x8] sm:$0xff pattern:$0x75316420]
        %v319 = vld.sshfl [vmem:[#allocation1 + $0x10] sm:$0xff pattern:$0x75316420]
        %320 = vrot.lane.b32.xlu0 %v317, 91
        %v321 = vpop.permute.xlu0 %320
        %322 = vrot.lane.b32.xlu0 %v318, 91
        %v323 = vpop.permute.xlu0 %322
        %324 = vrot.lane.b32.xlu0 %v319, 91
        %v325 = vpop.permute.xlu0 %324
        %vm326 = vcmask 744448
        %v327 = vsel %vm326, %v321, %v323
        %v328 = vsel %vm326, %v323, %v325
        %332 = vst [vmem:[#allocation1] ss:$2 sm:$0xff] %v189
        %s333 = scalar_lea.vmem [#allocation1], 16
        %334 = vst [vmem:[%s333] ss:$2 sm:$0xff] %v190
        %v335 = vld.sshfl [vmem:[#allocation1] sm:$0xff pattern:$0x75316420]
        %v336 = vld.sshfl [vmem:[#allocation1 + $0x8] sm:$0xff pattern:$0x75316420]
        %v337 = vld.sshfl [vmem:[#allocation1 + $0x10] sm:$0xff pattern:$0x75316420]
        %338 = vrot.lane.b32.xlu0 %v335, 90
        %v339 = vpop.permute.xlu0 %338
        %340 = vrot.lane.b32.xlu0 %v336, 90
        %v341 = vpop.permute.xlu0 %340
        %342 = vrot.lane.b32.xlu0 %v337, 90
        %v343 = vpop.permute.xlu0 %342
        %vm344 = vcmask 736256
        %v345 = vsel %vm344, %v339, %v341
        %v346 = vsel %vm344, %v341, %v343
        %vm347 = vcmask 1043456
        %v348 = vsel %vm347, %v196, %v216
        %v349 = vsel %vm347, %v197, %v217
        %v350 = vsel %vm347, %v198, %v214
        %v351 = vsel %vm347, %v234, %v253
        %v352 = vsel %vm347, %v235, %v254
        %v353 = vsel %vm347, %v232, %v251
        %v354 = vsel %vm347, %v271, %v290
        %v355 = vsel %vm347, %v272, %v291
        %v356 = vsel %vm347, %v269, %v288
        %v357 = vsel %vm347, %v308, %v327
        %v358 = vsel %vm347, %v309, %v328
        %v359 = vsel %vm347, %v306, %v325
        %v360 = vld [vmem:[%s1] sm:$0xff]
        %v361 = vld [vmem:[%s2] sm:$0xff]
        %363 = vset.pattern.permute.xlu0 0
        %364 = vperm.xlu0 %363, %v361
        %v365 = vpop.permute.xlu0 %364
        %vm367 = vcmask 293888
        %v369 = vsel %vm367, %v360, 0
        %v371 = vsel %vm347, %v345, 0
        %v373 = vsel %vm347, %v346, 0
        %v375 = vsel %vm347, %v343, 0
        %377 = vmatpush.msra.mxu0 0.0
        %378 = vmatpush.msra.mxu0 0.0
        %379 = vmatpush.msra.mxu0 0.0
        %380 = vmatpush.msra.mxu0 0.0
        %381 = vmatpush.msra.mxu0 0.0
        %382 = vmatpush.msra.mxu0 0.0
        %383 = vmatpush.msra.mxu0 0.0
        %384 = vmatpush.msra.mxu0 0.0
        %385 = vmatpush.msra.mxu0 0.0
        %386 = vmatpush.msra.mxu0 0.0
        %387 = vmatpush.msra.mxu0 0.0
        %388 = vmatpush.msra.mxu0 %v371
        %389 = vmatpush.msra.mxu0 %v357
        %390 = vmatpush.msra.mxu0 %v354
        %391 = vmatpush.msra.mxu0 %v351
        %392 = vmatpush.msra.mxu0 %v348
        %393 = vmatmul.f32.gmra.mxu0 %v369
        %v394 = vpop.f32.mrf.mxu0
        %v395 = vadd.f32 %v365, %v394
        %396 = vdwg.mxu0
        %397 = vmatpush.msra.mxu0 0.0
        %398 = vmatpush.msra.mxu0 0.0
        %399 = vmatpush.msra.mxu0 0.0
        %400 = vmatpush.msra.mxu0 0.0
        %401 = vmatpush.msra.mxu0 0.0
        %402 = vmatpush.msra.mxu0 0.0
        %403 = vmatpush.msra.mxu0 0.0
        %404 = vmatpush.msra.mxu0 0.0
        %405 = vmatpush.msra.mxu0 0.0
        %406 = vmatpush.msra.mxu0 0.0
        %407 = vmatpush.msra.mxu0 0.0
        %408 = vmatpush.msra.mxu0 %v373
        %409 = vmatpush.msra.mxu0 %v358
        %410 = vmatpush.msra.mxu0 %v355
        %411 = vmatpush.msra.mxu0 %v352
        %412 = vmatpush.msra.mxu0 %v349
        %413 = vmatmul.f32.gmra.mxu0 %v369
        %v414 = vpop.f32.mrf.mxu0
        %v415 = vadd.f32 %v365, %v414
        %416 = vdwg.mxu0
        %417 = vmatpush.msra.mxu0 0.0
        %418 = vmatpush.msra.mxu0 0.0
        %419 = vmatpush.msra.mxu0 0.0
        %420 = vmatpush.msra.mxu0 0.0
        %421 = vmatpush.msra.mxu0 0.0
        %422 = vmatpush.msra.mxu0 0.0
        %423 = vmatpush.msra.mxu0 0.0
        %424 = vmatpush.msra.mxu0 0.0
        %425 = vmatpush.msra.mxu0 0.0
        %426 = vmatpush.msra.mxu0 0.0
        %427 = vmatpush.msra.mxu0 0.0
        %428 = vmatpush.msra.mxu0 %v375
        %429 = vmatpush.msra.mxu0 %v359
        %430 = vmatpush.msra.mxu0 %v356
        %431 = vmatpush.msra.mxu0 %v353
        %432 = vmatpush.msra.mxu0 %v350
        %433 = vmatmul.f32.gmra.mxu0 %v369
        %v434 = vpop.f32.mrf.mxu0
        %v435 = vadd.f32 %v365, %v434
        %436 = vdwg.mxu0
        %437 = vst [vmem:[%s188] sm:$0xff] %v395
        %438 = vst [vmem:[%s188 + $0x8] sm:$0xff] %v415
        %vm439 = vcmask 261120
        %440 = vst.msk [vmem:[%s188 + $0x10] sm:$0xff] %vm439, %v435
        %s441 = sand.u32 %s96, 1
        %s442 = scalar_lea.sflag [#allocation4], %s441
        %s443 = sand.u32 %s96, 1
        %s444 = smul.addr %s443, 24
        %s445 = scalar_lea.vmem [#allocation5], %s444
        // Predicated region
        $region37: #{tpu_custom_call.1} parent=31 // pred_check
          %p446 = pneg %p106
        $region38: #{tpu_custom_call.1} parent=31 // pred_check_branch
          %448 = sbr.rel (%p446) target = $region40
        $region39: #{tpu_custom_call.1} parent=31 // pred_region
          %450 = vsyncadd %s442, 0
          %s451 = smul.addr %s20, 3
          %s452 = smul.addr %s451, 8
          %s453 = scalar_lea.hbm %s3, %s452
          %s455 = sshll.u32 %s445, 4
          %s456 = int_to_ptr.vmem [resolvable:$true] %s455
          %s457 = sshll.u32 %s453, 4
          %s458 = int_to_ptr.hbm [resolvable:$true] %s457
          %460 = dma.vmem_to_hbm [thread:$0]  %s456, 384, %s458, %s442
        $region40: #{tpu_custom_call.1} parent=31 // pred_fallthru
          _
      $region32: #{tpu_custom_call.1} parent=5 // pred_fallthru
        _
      %p461 = scmp.le.s32.totalorder 2, %s15
      // Predicated region
      $region41: #{tpu_custom_call.1} parent=5 // pred_check
        %p462 = pneg %p461
      $region42: #{tpu_custom_call.1} parent=5 // pred_check_branch
        %464 = sbr.rel (%p462) target = $region44
      $region43: #{tpu_custom_call.1} parent=5 // pred_region
        %s465 = ssub.s32 %s15, 2
        // Predicated region
        $region45: #{tpu_custom_call.1} parent=43 // pred_check
          %p466 = pneg %p112
        $region46: #{tpu_custom_call.1} parent=43 // pred_check_branch
          %468 = sbr.rel (%p466) target = $region48
        $region47: #{tpu_custom_call.1} parent=43 // pred_region
          %s469 = sand.u32 %s97, 1
          %s470 = scalar_lea.sflag [#allocation4], %s469
          %s471 = sand.u32 %s97, 1
          %s472 = smul.addr %s471, 24
          %s473 = scalar_lea.vmem [#allocation5], %s472
          %475 = dma.done %s470, 384
        $region48: #{tpu_custom_call.1} parent=43 // pred_fallthru
          _
      $region44: #{tpu_custom_call.1} parent=5 // pred_fallthru
        _
    $region6: #{tpu_custom_call.1} parent=1 // loop_footer
      %s19 = sadd.s32 1, %s15
    $region7: #{tpu_custom_call.1} parent=1 // loop_footer_branch
      %14 = sbr.rel target = $region3
    $region8: #{tpu_custom_call.1} parent=1 // loop_exit
      _
    %476 = vsyncpa [#allocation3], 1
    %s477 = scalar_lea.sflag [#allocation3], 1
    %478 = vsyncpa %s477, 1
    %479 = vsyncpa [#allocation4], 1
    %s480 = scalar_lea.sflag [#allocation4], 1
    %481 = vsyncpa %s480, 1

</llo_original>
